<compile_context>
chip_gen: v7x
topology: tpu7x:2x2x1
jax: 0.10.0
libtpu: 0.0.40
codegen_flags: <defaults>
</compile_context>

<pallas_src>
import math
import functools

import numpy as np
import jax
import jax.numpy as jnp
from jax.experimental import pallas as pl
from jax.experimental.pallas import tpu as pltpu


# --------------------------------------------------------------------------- #
# Kernels
# --------------------------------------------------------------------------- #
def _pe_kernel(invfreq_ref, phase_ref, x_ref, o_ref, *, tile_s):
    # x_ref / o_ref: (tile_s, B*E) ; invfreq_ref / phase_ref: (1, B*E), resident
    s0 = pl.program_id(0) * tile_s
    ts = x_ref.shape[0]
    pos = (s0 + jax.lax.broadcasted_iota(jnp.int32, (ts, 1), 0)).astype(jnp.float32)
    pe = jnp.sin(pos * invfreq_ref[...] + phase_ref[...])          # single EUP op
    o_ref[...] = (x_ref[...].astype(jnp.float32) + pe).astype(o_ref.dtype)


def _pe_dropout_kernel(invfreq_ref, phase_ref, x_ref, bits_ref, o_ref, *,
                       tile_s, threshold, scale):
    s0 = pl.program_id(0) * tile_s
    ts = x_ref.shape[0]
    pos = (s0 + jax.lax.broadcasted_iota(jnp.int32, (ts, 1), 0)).astype(jnp.float32)
    pe = jnp.sin(pos * invfreq_ref[...] + phase_ref[...])
    y = x_ref[...].astype(jnp.float32) + pe
    # keep iff bits >= round(p * 2^32)  ->  P(keep) = 1 - p  (no int->float conv)
    keep = bits_ref[...] >= jnp.uint32(threshold)
    o_ref[...] = jnp.where(keep, y * jnp.float32(scale),
                           jnp.float32(0.0)).astype(o_ref.dtype)


# --------------------------------------------------------------------------- #
# Wrapper
# --------------------------------------------------------------------------- #
def _choose_tile_s(S, row_bytes, target_bytes=2 * 1024 * 1024):
    """Largest sequence tile ~target_bytes per streamed buffer (multiple of 8)."""
    t = max(8, (target_bytes // max(row_bytes, 1)) // 8 * 8)
    if t >= S:
        return S          # single block; block dim == full array dim is legal
    return t              # multiple of 8; OOB tail handled by Pallas (cdiv grid)


def positional_encoding(x, *, dropout_p=0.1, training=False, rng_key=None,
                        max_len=5000, tile_s=None):
    """x: (S, B, E) array. Returns dropout(x + sinusoidal_pe[:S]) like the torch module."""
    S, B, E = x.shape
    if S > max_len:
        raise ValueError("sequence longer than max_len")
    if E % 2 != 0:
        raise ValueError("embed_dim must be even (matches the PyTorch module)")
    C = B * E
    x2 = x.reshape(S, C)                       # free row-major reshape -> lane-dense

    # Per flat column c (= b*E + e):
    #   inv_freq[c] = exp(-(e - e%2) * ln(10000)/E),  phase[c] = (e%2) * pi/2
    # so  pe = sin(pos*inv_freq + phase)  gives sin on even e and cos on odd e.
    e_idx = np.arange(E)
    inv_freq_e = np.exp(-(e_idx - (e_idx % 2)) * (math.log(10000.0) / float(E)))
    phase_e = (e_idx % 2) * (math.pi / 2.0)
    inv_freq = jnp.asarray(np.tile(inv_freq_e, B)[None, :], dtype=jnp.float32)
    phase = jnp.asarray(np.tile(phase_e, B)[None, :], dtype=jnp.float32)

    row_bytes = C * np.dtype(x.dtype).itemsize
    if tile_s is None:
        tile_s = _choose_tile_s(S, row_bytes)
    tile_s = min(int(tile_s), S)
    if tile_s < S:                             # keep block legal: multiple of 8
        tile_s = max(8, (tile_s // 8) * 8)

    grid = (pl.cdiv(S, tile_s),)
    const_spec = pl.BlockSpec((1, C), lambda i: (0, 0))        # resident in VMEM
    tile_spec = pl.BlockSpec((tile_s, C), lambda i: (i, 0))
    out_shape = jax.ShapeDtypeStruct((S, C), x.dtype)
    cparams = pltpu.CompilerParams(dimension_semantics=("parallel",))

    use_dropout = bool(training) and float(dropout_p) > 0.0
    if use_dropout:
        if rng_key is None:
            rng_key = jax.random.PRNGKey(0)
        bits = jax.random.bits(rng_key, (S, C), dtype=jnp.uint32)
        threshold = min(int(round(float(dropout_p) * 2.0 ** 32)), 2 ** 32 - 1)
        scale = 1.0 / (1.0 - float(dropout_p))
        kernel = functools.partial(_pe_dropout_kernel, tile_s=tile_s,
                                   threshold=threshold, scale=scale)
        out2 = pl.pallas_call(
            kernel,
            grid=grid,
            in_specs=[const_spec, const_spec, tile_spec, tile_spec],
            out_specs=tile_spec,
            out_shape=out_shape,
            compiler_params=cparams,
        )(inv_freq, phase, x2, bits)
    else:
        kernel = functools.partial(_pe_kernel, tile_s=tile_s)
        out2 = pl.pallas_call(
            kernel,
            grid=grid,
            in_specs=[const_spec, const_spec, tile_spec],
            out_specs=tile_spec,
            out_shape=out_shape,
            compiler_params=cparams,
        )(inv_freq, phase, x2)

    return out2.reshape(S, B, E)


# --------------------------------------------------------------------------- #
# Reference (NumPy port of the PyTorch module, eval mode)
# --------------------------------------------------------------------------- #
def _reference_eval(x_np, max_len=5000):
    S, B, E = x_np.shape
    position = np.arange(max_len)[:, None].astype(np.float64)
    div_term = np.exp(np.arange(0, E, 2).astype(np.float64) * (-math.log(10000.0) / E))
    pe = np.zeros((max_len, 1, E), dtype=np.float64)
    pe[:, 0, 0::2] = np.sin(position * div_term)
    pe[:, 0, 1::2] = np.cos(position * div_term)
    return (x_np.astype(np.float64) + pe[:S]).astype(np.float32)


if __name__ == "__main__":
    key = jax.random.PRNGKey(0)
    k_x, k_drop = jax.random.split(key)
    S, B, E = 16, 2, 32
    x = jax.random.normal(k_x, (S, B, E), dtype=jnp.float32)

    # eval mode (dropout is identity) -- check against the reference
    out_eval = jax.block_until_ready(
        positional_encoding(x, dropout_p=0.1, training=False))
    ref = _reference_eval(np.asarray(x))
    np.testing.assert_allclose(np.asarray(out_eval), ref, rtol=1e-5, atol=1e-5)

    # training mode -- kept entries must equal (x + pe) / (1 - p), rest are zero
    p = 0.1
    out_train = jax.block_until_ready(
        positional_encoding(x, dropout_p=p, training=True, rng_key=k_drop))
    assert out_train.shape == (S, B, E)
    ot = np.asarray(out_train)
    kept = ot != 0.0
    assert kept.any()
    np.testing.assert_allclose(ot[kept], (ref / (1.0 - p))[kept],
                               rtol=1e-4, atol=1e-5)

    print("KERNEL_OK")
</pallas_src>

<mosaic_0001>
module attributes {stable_mosaic.version = 11 : i64} {
  func.func @_pe_kernel(%arg0: i32, %arg1: memref<1x64xf32, #tpu.memory_space<vmem>>, %arg2: memref<1x64xf32, #tpu.memory_space<vmem>>, %arg3: memref<16x64xf32, #tpu.memory_space<vmem>>, %arg4: memref<16x64xf32, #tpu.memory_space<vmem>>) attributes {dimension_semantics = [#tpu.dimension_semantics<parallel>], iteration_bounds = array<i64: 1>, scalar_prefetch = 0 : i64, scratch_operands = 0 : i64, tpu.core_type = #tpu.core_type<tc>, window_params = [{pipeline_mode = #tpu.pipeline_mode<synchronous>, transform_indices = @transform_0, window_bounds = array<i64: 1, 64>}, {pipeline_mode = #tpu.pipeline_mode<synchronous>, transform_indices = @transform_1, window_bounds = array<i64: 1, 64>}, {transform_indices = @transform_2, window_bounds = array<i64: 16, 64>}, {transform_indices = @transform_3, window_bounds = array<i64: 16, 64>}]} {
    %c16_i32 = arith.constant 16 : i32
    %0 = arith.muli %arg0, %c16_i32 : i32
    %1 = tpu.iota {dimensions = array<i32: 0>} : vector<16x1xi32>
    %2 = vector.broadcast %0 : i32 to vector<16x1xi32>
    %3 = arith.addi %2, %1 : vector<16x1xi32>
    %4 = arith.sitofp %3 : vector<16x1xi32> to vector<16x1xf32>
    %c0 = arith.constant 0 : index
    %c0_0 = arith.constant 0 : index
    %5 = vector.load %arg1[%c0, %c0_0] : memref<1x64xf32, #tpu.memory_space<vmem>>, vector<1x64xf32>
    %6 = vector.broadcast %4 : vector<16x1xf32> to vector<16x64xf32>
    %7 = vector.broadcast %5 : vector<1x64xf32> to vector<16x64xf32>
    %8 = arith.mulf %6, %7 : vector<16x64xf32>
    %c0_1 = arith.constant 0 : index
    %c0_2 = arith.constant 0 : index
    %9 = vector.load %arg2[%c0_1, %c0_2] : memref<1x64xf32, #tpu.memory_space<vmem>>, vector<1x64xf32>
    %10 = vector.broadcast %9 : vector<1x64xf32> to vector<16x64xf32>
    %11 = arith.addf %8, %10 : vector<16x64xf32>
    %12 = math.sin %11 : vector<16x64xf32>
    %c0_3 = arith.constant 0 : index
    %c0_4 = arith.constant 0 : index
    %13 = vector.load %arg3[%c0_3, %c0_4] : memref<16x64xf32, #tpu.memory_space<vmem>>, vector<16x64xf32>
    %14 = arith.addf %13, %12 : vector<16x64xf32>
    %c0_5 = arith.constant 0 : index
    %c0_6 = arith.constant 0 : index
    %15 = vector.load %arg4[%c0_5, %c0_6] : memref<16x64xf32, #tpu.memory_space<vmem>>, vector<16x64xf32>
    tpu.vector_store %arg4[%c0_5, %c0_6], %14 {strides = array<i32>} : memref<16x64xf32, #tpu.memory_space<vmem>>, vector<16x64xf32>,
    return
  }
  func.func @transform_0(%arg0: i32) -> (i32, i32) {
    %c0_i32 = arith.constant 0 : i32
    %c0_i32_0 = arith.constant 0 : i32
    %c0_i32_1 = arith.constant 0 : i32
    return %c0_i32, %c0_i32_0 : i32, i32
  }
  func.func @transform_1(%arg0: i32) -> (i32, i32) {
    %c0_i32 = arith.constant 0 : i32
    %c0_i32_0 = arith.constant 0 : i32
    %c0_i32_1 = arith.constant 0 : i32
    return %c0_i32, %c0_i32_0 : i32, i32
  }
  func.func @transform_2(%arg0: i32) -> (i32, i32) {
    %c0_i32 = arith.constant 0 : i32
    %c0_i32_0 = arith.constant 0 : i32
    return %arg0, %c0_i32 : i32, i32
  }
  func.func @transform_3(%arg0: i32) -> (i32, i32) {
    %c0_i32 = arith.constant 0 : i32
    %c0_i32_0 = arith.constant 0 : i32
    return %arg0, %c0_i32 : i32, i32
  }
}

</mosaic_0001>

<llo_original>
// kernel: tpu_custom_call.1
$region0: #{tpu_custom_call.1}
  #allocation0 [shape = 'u32[]', space=smem, size = 0x4, offset = 0x4, fixed_abs, tag = 'smem constant byte address 0x4 - core index']
  #allocation1 [shape = 'u32[144,128]{1,0:T(1,128)}', space=vmem, size = 0x12000, scoped, tag = 'internal scratch']
  %s0 = inlined_call_operand.hbm [shape: f32[1,64], index: 0, kind: input, shape index: {}]
  %s1 = inlined_call_operand.vmem [shape: f32[1,64], index: 1, kind: input, shape index: {}]
  %s2 = inlined_call_operand.hbm [shape: f32[16,64], index: 2, kind: input, shape index: {}]
  %s3 = inlined_call_operand.hbm [shape: f32[16,64], index: 3, kind: output, shape index: {}]
  %s4 = sld [smem:[#allocation0]]
  $region30: #{tpu_custom_call.1} parent=0
    _
  %s6 = ssub.s32 1, %s4
  %s7 = scalar_select 0, %s6, %s4
  $region1: #{tpu_custom_call.1} parent=0
    #allocation2 [shape = 'u8[512]{0}', space=vmem, size = 0x400, scoped, tag = 'input window, operand 0, single buffered']
    #allocation3 [shape = 's32[1]{0}', space=sflag, size = 0x4, scoped, tag = 'scoped memory for tpu_custom_call.1']
    #allocation4 [shape = 's32[1]{0}', space=sflag, size = 0x4, scoped, tag = 'scoped memory for tpu_custom_call.1']
    #allocation5 [shape = 'u8[8192]{0}', space=vmem, size = 0x2000, scoped, tag = 'input window, operand 2, single buffered']
    #allocation6 [shape = 's32[1]{0}', space=sflag, size = 0x4, scoped, tag = 'scoped memory for tpu_custom_call.1']
    #allocation7 [shape = 'u8[8192]{0}', space=vmem, size = 0x2000, scoped, tag = 'output window, operand 0, single buffered']
    %8 = vsyncpa [#allocation3], 0
    %9 = vsyncpa [#allocation6], 0
    %10 = vsyncpa [#allocation4], 0
    // Predicated region
    $region2: #{tpu_custom_call.1} parent=1 // pred_check
      _
    $region3: #{tpu_custom_call.1} parent=1 // pred_check_branch
      %12 = sbr.rel (0) target = $region5
    $region4: #{tpu_custom_call.1} parent=1 // pred_region
      %s14 = ssub.s32 16, 16
      %15 = vsyncadd [#allocation3], %s14
      %s17 = sshll.u32 [#allocation2], 4
      %s18 = int_to_ptr.vmem [resolvable:$true] %s17
      %20 = dma.hbm_to_vmem [thread:$0]  %s0, 16, %s18, [#allocation3]
    $region5: #{tpu_custom_call.1} parent=1 // pred_fallthru
      _
    // Predicated region
    $region6: #{tpu_custom_call.1} parent=1 // pred_check
      _
    $region7: #{tpu_custom_call.1} parent=1 // pred_check_branch
      %22 = sbr.rel (0) target = $region9
    $region8: #{tpu_custom_call.1} parent=1 // pred_region
      _
    $region9: #{tpu_custom_call.1} parent=1 // pred_fallthru
      _
    // Predicated region
    $region10: #{tpu_custom_call.1} parent=1 // pred_check
      _
    $region11: #{tpu_custom_call.1} parent=1 // pred_check_branch
      %24 = sbr.rel (0) target = $region13
    $region12: #{tpu_custom_call.1} parent=1 // pred_region
      %s26 = ssub.s32 256, 256
      %27 = vsyncadd [#allocation6], %s26
      %s28 = sshll.u32 [#allocation5], 4
      %s29 = int_to_ptr.vmem [resolvable:$true] %s28
      %34 = dma.hbm_to_vmem [thread:$0]  %s2, 256, %s29, [#allocation6], 128, 128, 8
    $region13: #{tpu_custom_call.1} parent=1 // pred_fallthru
      _
    // Predicated region
    $region14: #{tpu_custom_call.1} parent=1 // pred_check
      _
    $region15: #{tpu_custom_call.1} parent=1 // pred_check_branch
      %36 = sbr.rel (0) target = $region17
    $region16: #{tpu_custom_call.1} parent=1 // pred_region
      %37 = dma.done [#allocation3], 16
    $region17: #{tpu_custom_call.1} parent=1 // pred_fallthru
      _
    // Predicated region
    $region18: #{tpu_custom_call.1} parent=1 // pred_check
      _
    $region19: #{tpu_custom_call.1} parent=1 // pred_check_branch
      %39 = sbr.rel (0) target = $region21
    $region20: #{tpu_custom_call.1} parent=1 // pred_region
      %40 = dma.done [#allocation6], 256
    $region21: #{tpu_custom_call.1} parent=1 // pred_fallthru
      _
    %s41 = smul.u32 0, 16
    %v42 = vlaneseq
    %v43 = vshrl.u32 %v42, 7
    %v44 = vadd.s32 %v43, 8
    %v45 = vstv %s41
    %v46 = vadd.s32 %v45, %v43
    %v47 = vadd.s32 %v45, %v44
    %v48 = vcvt.s32.f32 %v46
    %v49 = vcvt.s32.f32 %v47
    %v50 = vld [vmem:[#allocation2] sm:$0x1]
    %v52 = vlaneseq
    %v53 = vshrl.u32 %v52, 7
    %v54 = vsub.s32 0, %v53
    %v55 = vrot.slane %v50, %v54
    %v57 = vmul.f32 %v48, %v55
    %v58 = vmul.f32 %v49, %v55
    %v59 = vld [vmem:[%s1] sm:$0x1]
    %v61 = vlaneseq
    %v62 = vshrl.u32 %v61, 7
    %v63 = vsub.s32 0, %v62
    %v64 = vrot.slane %v59, %v63
    %v66 = vadd.f32 %v57, %v64
    %v67 = vadd.f32 %v58, %v64
    %v68 = vand.u32 2147483647, %v66
    %vm69 = vcmp.le.f32.partialorder %v68, 0.7853982
    %vm70 = vcmp.lt.s32.totalorder %v66, 0
    %v71 = vand.u32 %v66, 2139095040
    %v72 = vshrl.u32 %v71, 23
    %v73 = vsub.s32 %v72, 127
    %v74 = vand.u32 2147483647, %v66
    %v75 = vand.u32 %v74, 8388607
    %v76 = vor.u32 %v75, 8388608
    %v77 = vsub.s32 0, %v76
    %v78 = vadd.s32 %v73, 1
    %vm79 = vcmp.gt.s32.totalorder %v78, 0
    %v80 = vsel %vm79, %v78, 0
    %v81 = vshrl.u32 %v80, 5
    %v82 = vand.u32 %v80, 31
    %v83 = vsub.s32 32, %v82
    %v84 = vshrl.u32 683565275, %v83
    %v85 = vshll.u32 683565275, %v82
    %v86 = vshrl.u32 2475754826, %v83
    %v87 = vor.u32 %v85, %v86
    %v88 = vshll.u32 2475754826, %v82
    %v89 = vshrl.u32 2131351028, %v83
    %v90 = vor.u32 %v88, %v89
    %v91 = vshll.u32 2131351028, %v82
    %v92 = vshrl.u32 2102212464, %v83
    %v93 = vor.u32 %v91, %v92
    %v94 = vshll.u32 2102212464, %v82
    %v95 = vshrl.u32 920167782, %v83
    %v96 = vor.u32 %v94, %v95
    %v97 = vshll.u32 920167782, %v82
    %v98 = vshrl.u32 1326507024, %v83
    %v99 = vor.u32 %v97, %v98
    %vm100 = vcmp.lt.s32.totalorder %v81, 1
    %vm101 = vcmp.lt.s32.totalorder %v81, 2
    %vm102 = vcmp.lt.s32.totalorder %v81, 3
    %vm103 = vcmp.lt.s32.totalorder %v81, 4
    %v104 = vsel %vm100, %v84, %v87
    %v105 = vsel %vm103, %v93, 2102212464
    %v106 = vsel %vm102, %v90, %v105
    %v107 = vsel %vm101, %v104, %v106
    %v108 = vsel %vm100, %v87, %v90
    %v109 = vsel %vm103, %v96, 920167782
    %v110 = vsel %vm102, %v93, %v109
    %v111 = vsel %vm101, %v108, %v110
    %v112 = vsel %vm100, %v90, %v93
    %v113 = vsel %vm103, %v99, 1326507024
    %v114 = vsel %vm102, %v96, %v113
    %v115 = vsel %vm101, %v112, %v114
    %v116 = vshll.u32 %v76, 8
    %v117 = vmul.u32.u64.compose %v116, %v115
    %v118 = vextract.low.u32 %v117
    %v119 = vextract.high.u32 %v117
    %v120 = vmul.u32.u64.compose %v116, %v111
    %v121 = vextract.low.u32 %v120
    %v122 = vextract.high.u32 %v120
    %v123 = vmul.u32 %v116, %v107
    %v124 = vadd.s32 %v119, %v121
    %vm125 = vc.u32 %v119, %v121
    %v126 = vadd.s32 %v122, 1
    %v127 = vsel %vm125, %v126, %v122
    %v128 = vadd.s32 %v123, %v127
    %v129 = vadd.s32 %v128, 536870912
    %v130 = vshrl.u32 %v129, 30
    %v131 = vshll.u32 %v130, 30
    %v132 = vsub.s32 %v128, %v131
    %vm133 = vcmp.lt.s32.totalorder %v132, 0
    %v134 = vsub.s32 0, %v132
    %v135 = vsel %vm133, %v134, %v132
    %v136 = vclz %v135
    %v137 = vsub.s32 %v136, 2
    %vm138 = vcmp.gt.s32.totalorder 0, %v137
    %v139 = vsel %vm138, 0, %v137
    %v140 = vsub.s32 32, %v139
    %v141 = vshll.u32 %v132, %v139
    %v142 = vshrl.u32 %v124, %v140
    %v143 = vor.u32 %v141, %v142
    %v144 = vsub.s32 4294967266, %v139
    %v145 = vadd.s32 %v144, 127
    %v146 = vshll.u32 %v145, 23
    %v147 = vor.u32 4788187, %v146
    %v148 = vand.u32 2147483647, %v147
    %v150 = vcvt.s32.f32 %v143
    %v151 = vmul.f32 %v150, %v148
    %v152 = vxor.u32 %v151, 2147483648
    %v153 = vsel %vm70, %v152, %v151
    %v154 = vsub.s32 4, %v130
    %v155 = vsel %vm70, %v154, %v130
    %v156 = vsel %vm69, %v66, %v153
    %v157 = vsel %vm69, 0, %v155
    %v158 = vcosq.f32.pop %v156
    %v159 = vsinq.f32.pop %v156
    %vm160 = vweird.f32 %v66
    %v161 = vadd.s32 %v157, 3
    %v162 = vand.u32 %v161, 3
    %vm163 = vcmp.lt.s32.totalorder %v162, 2
    %vm164 = vcmp.eq.s32.totalorder %v162, 0
    %v165 = vxor.u32 %v159, 2147483648
    %v166 = vsel %vm164, %v158, %v165
    %vm167 = vcmp.eq.s32.totalorder %v162, 2
    %v168 = vxor.u32 %v158, 2147483648
    %v169 = vsel %vm167, %v168, %v159
    %v170 = vsel %vm163, %v166, %v169
    %v171 = vsel %vm160, nan, %v170
    %v172 = vand.u32 2147483647, %v67
    %vm173 = vcmp.le.f32.partialorder %v172, 0.7853982
    %vm174 = vcmp.lt.s32.totalorder %v67, 0
    %v175 = vand.u32 %v67, 2139095040
    %v176 = vshrl.u32 %v175, 23
    %v177 = vsub.s32 %v176, 127
    %v178 = vand.u32 2147483647, %v67
    %v179 = vand.u32 %v178, 8388607
    %v180 = vor.u32 %v179, 8388608
    %v181 = vsub.s32 0, %v180
    %v182 = vadd.s32 %v177, 1
    %vm183 = vcmp.gt.s32.totalorder %v182, 0
    %v184 = vsel %vm183, %v182, 0
    %v185 = vshrl.u32 %v184, 5
    %v186 = vand.u32 %v184, 31
    %v187 = vsub.s32 32, %v186
    %v188 = vshrl.u32 683565275, %v187
    %v189 = vshll.u32 683565275, %v186
    %v190 = vshrl.u32 2475754826, %v187
    %v191 = vor.u32 %v189, %v190
    %v192 = vshll.u32 2475754826, %v186
    %v193 = vshrl.u32 2131351028, %v187
    %v194 = vor.u32 %v192, %v193
    %v195 = vshll.u32 2131351028, %v186
    %v196 = vshrl.u32 2102212464, %v187
    %v197 = vor.u32 %v195, %v196
    %v198 = vshll.u32 2102212464, %v186
    %v199 = vshrl.u32 920167782, %v187
    %v200 = vor.u32 %v198, %v199
    %v201 = vshll.u32 920167782, %v186
    %v202 = vshrl.u32 1326507024, %v187
    %v203 = vor.u32 %v201, %v202
    %vm204 = vcmp.lt.s32.totalorder %v185, 1
    %vm205 = vcmp.lt.s32.totalorder %v185, 2
    %vm206 = vcmp.lt.s32.totalorder %v185, 3
    %vm207 = vcmp.lt.s32.totalorder %v185, 4
    %v208 = vsel %vm204, %v188, %v191
    %v209 = vsel %vm207, %v197, 2102212464
    %v210 = vsel %vm206, %v194, %v209
    %v211 = vsel %vm205, %v208, %v210
    %v212 = vsel %vm204, %v191, %v194
    %v213 = vsel %vm207, %v200, 920167782
    %v214 = vsel %vm206, %v197, %v213
    %v215 = vsel %vm205, %v212, %v214
    %v216 = vsel %vm204, %v194, %v197
    %v217 = vsel %vm207, %v203, 1326507024
    %v218 = vsel %vm206, %v200, %v217
    %v219 = vsel %vm205, %v216, %v218
    %v220 = vshll.u32 %v180, 8
    %v221 = vmul.u32.u64.compose %v220, %v219
    %v222 = vextract.low.u32 %v221
    %v223 = vextract.high.u32 %v221
    %v224 = vmul.u32.u64.compose %v220, %v215
    %v225 = vextract.low.u32 %v224
    %v226 = vextract.high.u32 %v224
    %v227 = vmul.u32 %v220, %v211
    %v228 = vadd.s32 %v223, %v225
    %vm229 = vc.u32 %v223, %v225
    %v230 = vadd.s32 %v226, 1
    %v231 = vsel %vm229, %v230, %v226
    %v232 = vadd.s32 %v227, %v231
    %v233 = vadd.s32 %v232, 536870912
    %v234 = vshrl.u32 %v233, 30
    %v235 = vshll.u32 %v234, 30
    %v236 = vsub.s32 %v232, %v235
    %vm237 = vcmp.lt.s32.totalorder %v236, 0
    %v238 = vsub.s32 0, %v236
    %v239 = vsel %vm237, %v238, %v236
    %v240 = vclz %v239
    %v241 = vsub.s32 %v240, 2
    %vm242 = vcmp.gt.s32.totalorder 0, %v241
    %v243 = vsel %vm242, 0, %v241
    %v244 = vsub.s32 32, %v243
    %v245 = vshll.u32 %v236, %v243
    %v246 = vshrl.u32 %v228, %v244
    %v247 = vor.u32 %v245, %v246
    %v248 = vsub.s32 4294967266, %v243
    %v249 = vadd.s32 %v248, 127
    %v250 = vshll.u32 %v249, 23
    %v251 = vor.u32 4788187, %v250
    %v252 = vand.u32 2147483647, %v251
    %v254 = vcvt.s32.f32 %v247
    %v255 = vmul.f32 %v254, %v252
    %v256 = vxor.u32 %v255, 2147483648
    %v257 = vsel %vm174, %v256, %v255
    %v258 = vsub.s32 4, %v234
    %v259 = vsel %vm174, %v258, %v234
    %v260 = vsel %vm173, %v67, %v257
    %v261 = vsel %vm173, 0, %v259
    %v262 = vcosq.f32.pop %v260
    %v263 = vsinq.f32.pop %v260
    %vm264 = vweird.f32 %v67
    %v265 = vadd.s32 %v261, 3
    %v266 = vand.u32 %v265, 3
    %vm267 = vcmp.lt.s32.totalorder %v266, 2
    %vm268 = vcmp.eq.s32.totalorder %v266, 0
    %v269 = vxor.u32 %v263, 2147483648
    %v270 = vsel %vm268, %v262, %v269
    %vm271 = vcmp.eq.s32.totalorder %v266, 2
    %v272 = vxor.u32 %v262, 2147483648
    %v273 = vsel %vm271, %v272, %v263
    %v274 = vsel %vm267, %v270, %v273
    %v275 = vsel %vm264, nan, %v274
    %v276 = vld [vmem:[#allocation5] sm:$0xff]
    %v277 = vld [vmem:[#allocation5 + $0x8] sm:$0xff]
    %v278 = vadd.f32 %v276, %v171
    %v279 = vadd.f32 %v277, %v275
    %vm280 = vcmask 523264
    %281 = vst.msk [vmem:[#allocation7] sm:$0xff] %vm280, %v278
    %282 = vst.msk [vmem:[#allocation7 + $0x8] sm:$0xff] %vm280, %v279
    // Predicated region
    $region22: #{tpu_custom_call.1} parent=1 // pred_check
      _
    $region23: #{tpu_custom_call.1} parent=1 // pred_check_branch
      %284 = sbr.rel (0) target = $region25
    $region24: #{tpu_custom_call.1} parent=1 // pred_region
      %s286 = ssub.s32 256, 256
      %287 = vsyncadd [#allocation4], %s286
      %s288 = sshll.u32 [#allocation7], 4
      %s289 = int_to_ptr.vmem [resolvable:$true] %s288
      %294 = dma.vmem_to_hbm [thread:$0]  %s289, 256, %s3, [#allocation4], 128, 128, 8
    $region25: #{tpu_custom_call.1} parent=1 // pred_fallthru
      _
    // Predicated region
    $region26: #{tpu_custom_call.1} parent=1 // pred_check
      _
    $region27: #{tpu_custom_call.1} parent=1 // pred_check_branch
      %296 = sbr.rel (0) target = $region29
    $region28: #{tpu_custom_call.1} parent=1 // pred_region
      %297 = dma.done [#allocation4], 256
    $region29: #{tpu_custom_call.1} parent=1 // pred_fallthru
      _
    %298 = vsyncpa [#allocation3], 1
    %299 = vsyncpa [#allocation6], 1
    %300 = vsyncpa [#allocation4], 1

</llo_original>
